<compile_context>
chip_gen: v6e
topology: v6e:2x2x1
jax: 0.10.0
libtpu: 0.0.40
codegen_flags: <defaults>
</compile_context>

<pallas_src>
import functools

import jax
import jax.numpy as jnp
from jax import lax
from jax.experimental import pallas as pl
from jax.experimental.pallas import tpu as pltpu


def _round_up(v, m):
    return (v + m - 1) // m * m


def _conv_bn_kernel(gamma_ref, beta_ref, x_ref, b_ref, o_ref, *, n_batch, inv_count):
    """One grid step = one output filter f.

    gamma_ref: (F,)                  SMEM  BN scale
    beta_ref:  (F,)                  SMEM  BN shift
    x_ref:     (N, C_eeg, T_in_al)   VMEM  zero-padded input slab (resident across filters)
    b_ref:     (T_in_al, T_out_al)   VMEM  banded conv matrix for this filter
    o_ref:     (N, C_eeg, T_out_al)  VMEM  conv+BN output block, stored directly into the
                                           (N, F, C_eeg, T_out_al) HBM layout (F squeezed)
    """
    f = pl.program_id(0)
    bmat = b_ref[...]  # hoist the banded matrix load out of the batch loop

    # Pass 1: conv on the MXU; stash the un-normalized result in the (VMEM) output block
    # and accumulate BN sum / sum-of-squares in the same sweep.
    def conv_body(b, carry):
        s, ss = carry
        acc = jnp.dot(x_ref[b], bmat, preferred_element_type=jnp.float32)  # (C_eeg, T_out_al)
        o_ref[b] = acc
        return s + jnp.sum(acc), ss + jnp.sum(acc * acc)

    s, ss = lax.fori_loop(0, n_batch, conv_body,
                          (jnp.float32(0.0), jnp.float32(0.0)), unroll=True)

    # BatchNorm2d(num_kernels, False): eps == 0.0, biased batch statistics.  Padded
    # output lanes are exactly zero (zero columns in B), so s/ss are unaffected; divide
    # by the true element count.
    mean = s * inv_count
    var = ss * inv_count - mean * mean
    inv_std = lax.rsqrt(var)                    # eps = 0.0, matches the PyTorch module
    scale = inv_std * gamma_ref[f]
    shift = beta_ref[f] - mean * scale

    # Pass 2: cheap affine pass over the VMEM-resident output block.
    def norm_body(b, c):
        o_ref[b] = o_ref[b] * scale + shift
        return c

    lax.fori_loop(0, n_batch, norm_body, jnp.int32(0), unroll=True)


def base_frequency_module_forward(x, conv_w, bn_gamma, bn_beta, *, frequency):
    """x: (N, 1, C_eeg, T) float32 (NCHW).  Returns (N, num_kernels, C_eeg, T)."""
    kern_length = frequency // 2
    padding_flag = (kern_length % 2 == 0)       # PyTorch: False if kern_length % 2 else True
    conv_pad = (kern_length - 1) // 2
    right_extra = 1 if padding_flag else 0

    n, c_in, c_eeg, t = x.shape
    assert c_in == 1
    num_kernels, k = conv_w.shape
    assert k == kern_length

    # Lane-dense sizes: pad the zero-extended input time axis and the output time axis up
    # to multiples of 128.  (For very large N*C_eeg*T configs, add a batch/time grid axis
    # so the blocks tile within the v7x 64 MiB VMEM budget.)
    t_in = t + 2 * conv_pad + right_extra
    t_in_al = _round_up(t_in, 128)
    t_out_al = _round_up(t, 128)

    # ZeroPad2d + symmetric conv padding + lane alignment folded into one jnp.pad.
    x3 = jnp.pad(x[:, 0].astype(jnp.float32),
                 ((0, 0), (0, 0), (conv_pad, t_in_al - t - conv_pad)))  # (N, C_eeg, T_in_al)

    # Banded conv matrix: B[f, i, j] = w[f, i - j] if 0 <= i - j < K and j < T else 0.
    i_idx = jnp.arange(t_in_al)[:, None]
    j_idx = jnp.arange(t_out_al)[None, :]
    tap = i_idx - j_idx
    valid = (tap >= 0) & (tap < kern_length) & (j_idx < t)
    bmat = jnp.where(valid[None, :, :],
                     conv_w.astype(jnp.float32)[:, jnp.clip(tap, 0, kern_length - 1)],
                     0.0)                                               # (F, T_in_al, T_out_al)

    kernel = functools.partial(_conv_bn_kernel, n_batch=n,
                               inv_count=1.0 / float(n * c_eeg * t))

    flops = (2 * num_kernels * n * c_eeg * t_in_al * t_out_al        # MXU conv
             + 2 * num_kernels * n * c_eeg * t_out_al)               # affine pass
    bytes_accessed = 4 * (x3.size + bmat.size + num_kernels * n * c_eeg * t_out_al)

    out = pl.pallas_call(
        kernel,
        out_shape=jax.ShapeDtypeStruct((n, num_kernels, c_eeg, t_out_al), jnp.float32),
        grid=(num_kernels,),
        in_specs=[
            pl.BlockSpec(memory_space=pltpu.MemorySpace.SMEM),              # gamma (F,)
            pl.BlockSpec(memory_space=pltpu.MemorySpace.SMEM),              # beta  (F,)
            pl.BlockSpec((n, c_eeg, t_in_al), lambda f: (0, 0, 0)),         # x slab, resident
            pl.BlockSpec((None, t_in_al, t_out_al), lambda f: (f, 0, 0)),   # B_f
        ],
        out_specs=pl.BlockSpec((n, None, c_eeg, t_out_al), lambda f: (0, f, 0, 0)),
        compiler_params=pltpu.CompilerParams(
            dimension_semantics=("parallel",),
            vmem_limit_bytes=64 * 1024 * 1024),
        cost_estimate=pl.CostEstimate(flops=int(flops),
                                      transcendentals=int(num_kernels),
                                      bytes_accessed=int(bytes_accessed)),
    )(bn_gamma.astype(jnp.float32), bn_beta.astype(jnp.float32), x3, bmat)

    # Already in (N, F, C_eeg, T_out_al) layout; drop lane padding if any.
    return out[..., :t] if t_out_al != t else out


def _reference_forward(x, conv_w, bn_gamma, bn_beta, *, frequency):
    """Pure-JAX reference matching the PyTorch forward (training-mode BN, eps=0)."""
    kern_length = frequency // 2
    padding_flag = (kern_length % 2 == 0)
    conv_pad = (kern_length - 1) // 2
    if padding_flag:
        x = jnp.pad(x, ((0, 0), (0, 0), (0, 0), (0, 1)))
    f, k = conv_w.shape
    w4 = conv_w.reshape(f, 1, 1, k)
    out = jax.lax.conv_general_dilated(
        x, w4, window_strides=(1, 1),
        padding=((0, 0), (conv_pad, conv_pad)),
        dimension_numbers=("NCHW", "OIHW", "NCHW"),
        precision=jax.lax.Precision.HIGHEST)
    mean = out.mean(axis=(0, 2, 3), keepdims=True)
    var = ((out - mean) ** 2).mean(axis=(0, 2, 3), keepdims=True)
    out = (out - mean) / jnp.sqrt(var)   # eps = 0.0
    return out * bn_gamma.reshape(1, -1, 1, 1) + bn_beta.reshape(1, -1, 1, 1)


if __name__ == "__main__":
    # Small config consistent with the module: frequency=16 -> kern_length=8 (even ->
    # padding_flag=True), num_kernels=4.  Input (batch=2, in_ch=1, eeg_channels=4, time=16).
    frequency = 16
    num_kernels = 4
    kern_length = frequency // 2
    n, c_eeg, t = 2, 4, 16

    key = jax.random.PRNGKey(0)
    kx, kw = jax.random.split(key)

    # Round x / weights to bf16-representable values so the comparison against the exact
    # f32 reference is insensitive to the MXU's internal pass count.
    x = jax.random.normal(kx, (n, 1, c_eeg, t), dtype=jnp.float32)
    x = x.astype(jnp.bfloat16).astype(jnp.float32)

    # Conv2d weight (F, 1, 1, K) stored as (F, K); BatchNorm default init gamma=1, beta=0.
    bound = 1.0 / (float(kern_length) ** 0.5)
    conv_w = jax.random.uniform(kw, (num_kernels, kern_length),
                                minval=-bound, maxval=bound, dtype=jnp.float32)
    conv_w = conv_w.astype(jnp.bfloat16).astype(jnp.float32)
    bn_gamma = jnp.ones((num_kernels,), jnp.float32)
    bn_beta = jnp.zeros((num_kernels,), jnp.float32)

    out = base_frequency_module_forward(x, conv_w, bn_gamma, bn_beta, frequency=frequency)
    out = jax.block_until_ready(out)

    ref = _reference_forward(x, conv_w, bn_gamma, bn_beta, frequency=frequency)
    assert out.shape == (n, num_kernels, c_eeg, t), out.shape
    max_err = float(jnp.max(jnp.abs(out - ref)))
    assert jnp.allclose(out, ref, rtol=2e-3, atol=2e-3), max_err

    print("KERNEL_OK")
</pallas_src>

<mosaic_0001>
module attributes {stable_mosaic.version = 11 : i64} {
  func.func @_conv_bn_kernel(%arg0: i32, %arg1: memref<4xf32, #tpu.memory_space<smem>>, %arg2: memref<4xf32, #tpu.memory_space<smem>>, %arg3: memref<2x4x128xf32, #tpu.memory_space<vmem>>, %arg4: memref<1x128x128xf32, #tpu.memory_space<vmem>>, %arg5: memref<2x1x4x128xf32, #tpu.memory_space<vmem>>) attributes {dimension_semantics = [#tpu.dimension_semantics<parallel>], iteration_bounds = array<i64: 4>, scalar_prefetch = 0 : i64, scratch_operands = 0 : i64, tpu.core_type = #tpu.core_type<tc>, window_params = [{transform_indices = @transform_0, window_bounds = array<i64: 4>}, {transform_indices = @transform_1, window_bounds = array<i64: 4>}, {pipeline_mode = #tpu.pipeline_mode<synchronous>, transform_indices = @transform_2, window_bounds = array<i64: 2, 4, 128>}, {transform_indices = @transform_3, window_bounds = array<i64: 1, 128, 128>}, {transform_indices = @transform_4, window_bounds = array<i64: 2, 1, 4, 128>}]} {
    %c0 = arith.constant 0 : index
    %c0_0 = arith.constant 0 : index
    %c0_1 = arith.constant 0 : index
    %0 = vector.load %arg4[%c0, %c0_0, %c0_1] : memref<1x128x128xf32, #tpu.memory_space<vmem>>, vector<1x128x128xf32>
    %1 = vector.shape_cast %0 : vector<1x128x128xf32> to vector<128x128xf32>
    %cst = arith.constant 0.000000e+00 : f32
    %cst_2 = arith.constant 0.000000e+00 : f32
    %c0_i32 = arith.constant 0 : i32
    %2 = arith.index_cast %c0_i32 : i32 to index
    %c0_3 = arith.constant 0 : index
    %c0_4 = arith.constant 0 : index
    %3 = vector.load %arg3[%2, %c0_3, %c0_4] : memref<2x4x128xf32, #tpu.memory_space<vmem>>, vector<1x4x128xf32>
    %4 = vector.shape_cast %3 : vector<1x4x128xf32> to vector<4x128xf32>
    %cst_5 = arith.constant dense<0.000000e+00> : vector<4x128xf32>
    %5 = tpu.matmul %4, %1, %cst_5 {dimension_numbers = #tpu.dot_dimension_numbers<[1], [0], [0], [1], [0, 0, 1, 1], [], []>} : vector<4x128xf32>, vector<128x128xf32>, vector<4x128xf32> -> vector<4x128xf32>
    %6 = arith.index_cast %c0_i32 : i32 to index
    %c0_6 = arith.constant 0 : index
    %c0_7 = arith.constant 0 : index
    %c0_8 = arith.constant 0 : index
    %7 = vector.load %arg5[%6, %c0_6, %c0_7, %c0_8] : memref<2x1x4x128xf32, #tpu.memory_space<vmem>>, vector<1x1x4x128xf32>
    %8 = vector.shape_cast %7 : vector<1x1x4x128xf32> to vector<4x128xf32>
    %9 = vector.shape_cast %5 : vector<4x128xf32> to vector<1x1x4x128xf32>
    tpu.vector_store %arg5[%6, %c0_6, %c0_7, %c0_8], %9 {strides = array<i32>} : memref<2x1x4x128xf32, #tpu.memory_space<vmem>>, vector<1x1x4x128xf32>,
    %10 = vector.shape_cast %5 : vector<4x128xf32> to vector<1x4x128xf32>
    %cst_9 = arith.constant dense<0.000000e+00> : vector<1xf32>
    %11 = vector.multi_reduction <add>, %10, %cst_9 [1, 2] : vector<1x4x128xf32> to vector<1xf32>
    %12 = vector.shape_cast %11 : vector<1xf32> to vector<1x1x1xf32>
    %13 = vector.extract %12[0, 0, 0] : f32 from vector<1x1x1xf32>
    %14 = arith.addf %cst, %13 : f32
    %15 = arith.mulf %5, %5 : vector<4x128xf32>
    %16 = vector.shape_cast %15 : vector<4x128xf32> to vector<1x4x128xf32>
    %cst_10 = arith.constant dense<0.000000e+00> : vector<1xf32>
    %17 = vector.multi_reduction <add>, %16, %cst_10 [1, 2] : vector<1x4x128xf32> to vector<1xf32>
    %18 = vector.shape_cast %17 : vector<1xf32> to vector<1x1x1xf32>
    %19 = vector.extract %18[0, 0, 0] : f32 from vector<1x1x1xf32>
    %20 = arith.addf %cst_2, %19 : f32
    %c1_i32 = arith.constant 1 : i32
    %21 = arith.index_cast %c1_i32 : i32 to index
    %c0_11 = arith.constant 0 : index
    %c0_12 = arith.constant 0 : index
    %22 = vector.load %arg3[%21, %c0_11, %c0_12] : memref<2x4x128xf32, #tpu.memory_space<vmem>>, vector<1x4x128xf32>
    %23 = vector.shape_cast %22 : vector<1x4x128xf32> to vector<4x128xf32>
    %cst_13 = arith.constant dense<0.000000e+00> : vector<4x128xf32>
    %24 = tpu.matmul %23, %1, %cst_13 {dimension_numbers = #tpu.dot_dimension_numbers<[1], [0], [0], [1], [0, 0, 1, 1], [], []>} : vector<4x128xf32>, vector<128x128xf32>, vector<4x128xf32> -> vector<4x128xf32>
    %25 = arith.index_cast %c1_i32 : i32 to index
    %c0_14 = arith.constant 0 : index
    %c0_15 = arith.constant 0 : index
    %c0_16 = arith.constant 0 : index
    %26 = vector.load %arg5[%25, %c0_14, %c0_15, %c0_16] : memref<2x1x4x128xf32, #tpu.memory_space<vmem>>, vector<1x1x4x128xf32>
    %27 = vector.shape_cast %26 : vector<1x1x4x128xf32> to vector<4x128xf32>
    %28 = vector.shape_cast %24 : vector<4x128xf32> to vector<1x1x4x128xf32>
    tpu.vector_store %arg5[%25, %c0_14, %c0_15, %c0_16], %28 {strides = array<i32>} : memref<2x1x4x128xf32, #tpu.memory_space<vmem>>, vector<1x1x4x128xf32>,
    %29 = vector.shape_cast %24 : vector<4x128xf32> to vector<1x4x128xf32>
    %cst_17 = arith.constant dense<0.000000e+00> : vector<1xf32>
    %30 = vector.multi_reduction <add>, %29, %cst_17 [1, 2] : vector<1x4x128xf32> to vector<1xf32>
    %31 = vector.shape_cast %30 : vector<1xf32> to vector<1x1x1xf32>
    %32 = vector.extract %31[0, 0, 0] : f32 from vector<1x1x1xf32>
    %33 = arith.addf %14, %32 : f32
    %34 = arith.mulf %24, %24 : vector<4x128xf32>
    %35 = vector.shape_cast %34 : vector<4x128xf32> to vector<1x4x128xf32>
    %cst_18 = arith.constant dense<0.000000e+00> : vector<1xf32>
    %36 = vector.multi_reduction <add>, %35, %cst_18 [1, 2] : vector<1x4x128xf32> to vector<1xf32>
    %37 = vector.shape_cast %36 : vector<1xf32> to vector<1x1x1xf32>
    %38 = vector.extract %37[0, 0, 0] : f32 from vector<1x1x1xf32>
    %39 = arith.addf %20, %38 : f32
    %c2_i32 = arith.constant 2 : i32
    %cst_19 = arith.constant 7.812500e-03 : f32
    %40 = arith.mulf %33, %cst_19 : f32
    %cst_20 = arith.constant 7.812500e-03 : f32
    %41 = arith.mulf %39, %cst_20 : f32
    %42 = arith.mulf %40, %40 : f32
    %43 = arith.subf %41, %42 : f32
    %44 = math.rsqrt %43 : f32
    %45 = arith.index_cast %arg0 : i32 to index
    %46 = memref.load %arg1[%45] : memref<4xf32, #tpu.memory_space<smem>>
    %47 = arith.mulf %44, %46 : f32
    %48 = arith.index_cast %arg0 : i32 to index
    %49 = memref.load %arg2[%48] : memref<4xf32, #tpu.memory_space<smem>>
    %50 = arith.mulf %40, %47 : f32
    %51 = arith.subf %49, %50 : f32
    %c0_i32_21 = arith.constant 0 : i32
    %52 = arith.index_cast %c0_i32_21 : i32 to index
    %c0_22 = arith.constant 0 : index
    %c0_23 = arith.constant 0 : index
    %c0_24 = arith.constant 0 : index
    %53 = vector.load %arg5[%52, %c0_22, %c0_23, %c0_24] : memref<2x1x4x128xf32, #tpu.memory_space<vmem>>, vector<1x1x4x128xf32>
    %54 = vector.shape_cast %53 : vector<1x1x4x128xf32> to vector<4x128xf32>
    %55 = vector.broadcast %47 : f32 to vector<4x128xf32>
    %56 = arith.mulf %54, %55 : vector<4x128xf32>
    %57 = vector.broadcast %51 : f32 to vector<4x128xf32>
    %58 = arith.addf %56, %57 : vector<4x128xf32>
    %59 = arith.index_cast %c0_i32_21 : i32 to index
    %c0_25 = arith.constant 0 : index
    %c0_26 = arith.constant 0 : index
    %c0_27 = arith.constant 0 : index
    %60 = vector.load %arg5[%59, %c0_25, %c0_26, %c0_27] : memref<2x1x4x128xf32, #tpu.memory_space<vmem>>, vector<1x1x4x128xf32>
    %61 = vector.shape_cast %60 : vector<1x1x4x128xf32> to vector<4x128xf32>
    %62 = vector.shape_cast %58 : vector<4x128xf32> to vector<1x1x4x128xf32>
    tpu.vector_store %arg5[%59, %c0_25, %c0_26, %c0_27], %62 {strides = array<i32>} : memref<2x1x4x128xf32, #tpu.memory_space<vmem>>, vector<1x1x4x128xf32>,
    %c1_i32_28 = arith.constant 1 : i32
    %63 = arith.index_cast %c1_i32_28 : i32 to index
    %c0_29 = arith.constant 0 : index
    %c0_30 = arith.constant 0 : index
    %c0_31 = arith.constant 0 : index
    %64 = vector.load %arg5[%63, %c0_29, %c0_30, %c0_31] : memref<2x1x4x128xf32, #tpu.memory_space<vmem>>, vector<1x1x4x128xf32>
    %65 = vector.shape_cast %64 : vector<1x1x4x128xf32> to vector<4x128xf32>
    %66 = vector.broadcast %47 : f32 to vector<4x128xf32>
    %67 = arith.mulf %65, %66 : vector<4x128xf32>
    %68 = vector.broadcast %51 : f32 to vector<4x128xf32>
    %69 = arith.addf %67, %68 : vector<4x128xf32>
    %70 = arith.index_cast %c1_i32_28 : i32 to index
    %c0_32 = arith.constant 0 : index
    %c0_33 = arith.constant 0 : index
    %c0_34 = arith.constant 0 : index
    %71 = vector.load %arg5[%70, %c0_32, %c0_33, %c0_34] : memref<2x1x4x128xf32, #tpu.memory_space<vmem>>, vector<1x1x4x128xf32>
    %72 = vector.shape_cast %71 : vector<1x1x4x128xf32> to vector<4x128xf32>
    %73 = vector.shape_cast %69 : vector<4x128xf32> to vector<1x1x4x128xf32>
    tpu.vector_store %arg5[%70, %c0_32, %c0_33, %c0_34], %73 {strides = array<i32>} : memref<2x1x4x128xf32, #tpu.memory_space<vmem>>, vector<1x1x4x128xf32>,
    %c2_i32_35 = arith.constant 2 : i32
    return
  }
  func.func @transform_0(%arg0: i32) -> i32 {
    %c0_i32 = arith.constant 0 : i32
    %c0_i32_0 = arith.constant 0 : i32
    return %c0_i32 : i32
  }
  func.func @transform_1(%arg0: i32) -> i32 {
    %c0_i32 = arith.constant 0 : i32
    %c0_i32_0 = arith.constant 0 : i32
    return %c0_i32 : i32
  }
  func.func @transform_2(%arg0: i32) -> (i32, i32, i32) {
    %c0_i32 = arith.constant 0 : i32
    %c0_i32_0 = arith.constant 0 : i32
    %c0_i32_1 = arith.constant 0 : i32
    %c0_i32_2 = arith.constant 0 : i32
    return %c0_i32, %c0_i32_0, %c0_i32_1 : i32, i32, i32
  }
  func.func @transform_3(%arg0: i32) -> (i32, i32, i32) {
    %c0_i32 = arith.constant 0 : i32
    %c0_i32_0 = arith.constant 0 : i32
    %c0_i32_1 = arith.constant 0 : i32
    return %arg0, %c0_i32, %c0_i32_0 : i32, i32, i32
  }
  func.func @transform_4(%arg0: i32) -> (i32, i32, i32, i32) {
    %c0_i32 = arith.constant 0 : i32
    %c0_i32_0 = arith.constant 0 : i32
    %c0_i32_1 = arith.constant 0 : i32
    %c0_i32_2 = arith.constant 0 : i32
    return %c0_i32, %arg0, %c0_i32_0, %c0_i32_1 : i32, i32, i32, i32
  }
}

</mosaic_0001>

<llo_original>
// kernel: tpu_custom_call.1
$region0: #{tpu_custom_call.1}
  #allocation0 [shape = 'u32[]', space=smem, size = 0x4, offset = 0x4, fixed_abs, tag = 'smem constant byte address 0x4 - core index']
  #allocation1 [shape = 'u32[144,128]{1,0:T(1,128)}', space=vmem, size = 0x12000, scoped, tag = 'internal scratch']
  %s0 = inlined_call_operand.hbm [shape: f32[4], index: 0, kind: input, shape index: {}]
  %s1 = inlined_call_operand.vmem [shape: f32[4], index: 1, kind: input, shape index: {}]
  %s2 = inlined_call_operand.hbm [shape: f32[2,4,128], index: 2, kind: input, shape index: {}]
  %s3 = inlined_call_operand.hbm [shape: f32[4,128,128], index: 3, kind: input, shape index: {}]
  %s4 = inlined_call_operand.hbm [shape: f32[2,4,4,128], index: 4, kind: output, shape index: {}]
  %s5 = sld [smem:[#allocation0]]
  $region65: #{tpu_custom_call.1} parent=0
    _
  %s7 = ssub.s32 1, %s5
  %s8 = scalar_select 0, %s7, %s5
  $region1: #{tpu_custom_call.1} parent=0
    #allocation2 [shape = 'u8[512]{0}', space=smem, size = 0x200, scoped, tag = 'input window, operand 0, single buffered']
    #allocation3 [shape = 's32[2]{0}', space=sflag, size = 0x8, scoped, tag = 'scoped memory for tpu_custom_call.1']
    #allocation4 [shape = 's32[2]{0}', space=sflag, size = 0x8, scoped, tag = 'scoped memory for tpu_custom_call.1']
    #allocation5 [shape = 's32[2]{0}', space=sflag, size = 0x8, scoped, tag = 'scoped memory for tpu_custom_call.1']
    #allocation6 [shape = 's32[2]{0}', space=sflag, size = 0x8, scoped, tag = 'scoped memory for tpu_custom_call.1']
    #allocation7 [shape = 'u8[512]{0}', space=smem, size = 0x200, scoped, tag = 'input window, operand 1, single buffered']
    #allocation8 [shape = 'u8[4096]{0}', space=vmem, size = 0x1000, scoped, tag = 'input window, operand 2, single buffered']
    #allocation9 [shape = 'u8[131072]{0}', space=vmem, size = 0x20000, scoped, tag = 'input window, operand 3']
    #allocation10 [shape = 's32[2]{0}', space=sflag, size = 0x8, scoped, tag = 'scoped memory for tpu_custom_call.1']
    #allocation11 [shape = 'u8[8192]{0}', space=vmem, size = 0x2000, scoped, tag = 'output window, operand 0']
    %9 = vsyncpa [#allocation5], 0
    %10 = vsyncpa [#allocation6], 0
    %11 = vsyncpa [#allocation3], 0
    %12 = vsyncpa [#allocation10], 0
    %s13 = scalar_lea.sflag [#allocation10], 1
    %14 = vsyncpa %s13, 0
    %15 = vsyncpa [#allocation4], 0
    %s16 = scalar_lea.sflag [#allocation4], 1
    %17 = vsyncpa %s16, 0
    loop: start=0, step=1, limit=6
    $region2: #{tpu_custom_call.1} parent=1 // loop_pre_header
      _
    $region3: #{tpu_custom_call.1} parent=1 // loop_header
      %s19 = sphi 0, %s23
      %p20 = scmp.ge.s32.totalorder %s19, 6
      %s27 = sphi 0, %s27
      %s29 = sphi 0, %s27
      %s30 = sphi 0, %s29
      %s44 = sphi 0, %s30
      %s48 = sphi 0, %s48
      %s50 = sphi 0, %s48
      %s51 = sphi 0, %s50
      %s65 = sphi 0, %s51
      %s69 = sphi 0, %s69
      %s71 = sphi 0, %s69
      %s72 = sphi 0, %s71
      %s86 = sphi 0, %s72
      %s92 = sphi 0, %s94
      %s95 = sphi 0, %s92
      %s96 = sphi 0, %s95
      %s112 = sphi 0, %s96
      %s118 = sphi 0, %s120
      %s121 = sphi 0, %s118
      %s122 = sphi 0, %s121
      %s138 = sphi 0, %s122
    $region4: #{tpu_custom_call.1} parent=1 // loop_header_branch
      %22 = sbr.rel (%p20) target = $region8
    $region5: #{tpu_custom_call.1} parent=1 // loop_body
      %s24 = ssub.s32 %s19, 1
      %s25 = ssub.s32 %s19, 2
      %s26 = sadd.s32 %s19, 1
      %s28 = sadd.s32 %s27, 1
      %p31 = scmp.eq.s32.totalorder %s19, 3
      %p32 = scmp.ne.s32.totalorder %s27, %s29
      %p33 = scmp.eq.s32.totalorder %s19, 0
      %p34 = por %p32, %p33
      %p35 = scmp.ne.s32.totalorder %s27, %s29
      %p36 = scmp.eq.s32.totalorder %s24, 3
      %p37 = por %p35, %p36
      %p38 = scmp.ne.s32.totalorder %s29, %s30
      %p39 = scmp.eq.s32.totalorder %s24, 0
      %p40 = por %p38, %p39
      %p41 = scmp.ne.s32.totalorder %s29, %s30
      %p42 = scmp.eq.s32.totalorder %s25, 3
      %p43 = por %p41, %p42
      %p45 = scmp.ne.s32.totalorder %s30, %s44
      %p46 = scmp.eq.s32.totalorder %s25, 0
      %p47 = por %p45, %p46
      %s49 = sadd.s32 %s48, 1
      %p52 = scmp.eq.s32.totalorder %s19, 3
      %p53 = scmp.ne.s32.totalorder %s48, %s50
      %p54 = scmp.eq.s32.totalorder %s19, 0
      %p55 = por %p53, %p54
      %p56 = scmp.ne.s32.totalorder %s48, %s50
      %p57 = scmp.eq.s32.totalorder %s24, 3
      %p58 = por %p56, %p57
      %p59 = scmp.ne.s32.totalorder %s50, %s51
      %p60 = scmp.eq.s32.totalorder %s24, 0
      %p61 = por %p59, %p60
      %p62 = scmp.ne.s32.totalorder %s50, %s51
      %p63 = scmp.eq.s32.totalorder %s25, 3
      %p64 = por %p62, %p63
      %p66 = scmp.ne.s32.totalorder %s51, %s65
      %p67 = scmp.eq.s32.totalorder %s25, 0
      %p68 = por %p66, %p67
      %s70 = sadd.s32 %s69, 1
      %p73 = scmp.eq.s32.totalorder %s19, 3
      %p74 = scmp.ne.s32.totalorder %s69, %s71
      %p75 = scmp.eq.s32.totalorder %s19, 0
      %p76 = por %p74, %p75
      %p77 = scmp.ne.s32.totalorder %s69, %s71
      %p78 = scmp.eq.s32.totalorder %s24, 3
      %p79 = por %p77, %p78
      %p80 = scmp.ne.s32.totalorder %s71, %s72
      %p81 = scmp.eq.s32.totalorder %s24, 0
      %p82 = por %p80, %p81
      %p83 = scmp.ne.s32.totalorder %s71, %s72
      %p84 = scmp.eq.s32.totalorder %s25, 3
      %p85 = por %p83, %p84
      %p87 = scmp.ne.s32.totalorder %s72, %s86
      %p88 = scmp.eq.s32.totalorder %s25, 0
      %p89 = por %p87, %p88
      %s90 = ssub.s32 %s19, %s26
      %p91 = scmp.eq.s32.totalorder %s90, 0
      %s93 = sadd.s32 %s92, 1
      %s94 = scalar_select %p91, %s92, %s93
      %p97 = pneg %p91
      %p98 = scmp.eq.s32.totalorder %s19, 3
      %p99 = por %p97, %p98
      %p100 = scmp.ne.s32.totalorder %s92, %s95
      %p101 = scmp.eq.s32.totalorder %s19, 0
      %p102 = por %p100, %p101
      %p103 = scmp.ne.s32.totalorder %s92, %s95
      %p104 = scmp.eq.s32.totalorder %s24, 3
      %p105 = por %p103, %p104
      %p106 = scmp.ne.s32.totalorder %s95, %s96
      %p107 = scmp.eq.s32.totalorder %s24, 0
      %p108 = por %p106, %p107
      %p109 = scmp.ne.s32.totalorder %s95, %s96
      %p110 = scmp.eq.s32.totalorder %s25, 3
      %p111 = por %p109, %p110
      %p113 = scmp.ne.s32.totalorder %s96, %s112
      %p114 = scmp.eq.s32.totalorder %s25, 0
      %p115 = por %p113, %p114
      %s116 = ssub.s32 %s19, %s26
      %p117 = scmp.eq.s32.totalorder %s116, 0
      %s119 = sadd.s32 %s118, 1
      %s120 = scalar_select %p117, %s118, %s119
      %p123 = pneg %p117
      %p124 = scmp.eq.s32.totalorder %s19, 3
      %p125 = por %p123, %p124
      %p126 = scmp.ne.s32.totalorder %s118, %s121
      %p127 = scmp.eq.s32.totalorder %s19, 0
      %p128 = por %p126, %p127
      %p129 = scmp.ne.s32.totalorder %s118, %s121
      %p130 = scmp.eq.s32.totalorder %s24, 3
      %p131 = por %p129, %p130
      %p132 = scmp.ne.s32.totalorder %s121, %s122
      %p133 = scmp.eq.s32.totalorder %s24, 0
      %p134 = por %p132, %p133
      %p135 = scmp.ne.s32.totalorder %s121, %s122
      %p136 = scmp.eq.s32.totalorder %s25, 3
      %p137 = por %p135, %p136
      %p139 = scmp.ne.s32.totalorder %s122, %s138
      %p140 = scmp.eq.s32.totalorder %s25, 0
      %p141 = por %p139, %p140
      %p142 = scmp.le.s32.totalorder 1, %s19
      %p143 = scmp.lt.s32.totalorder %s19, 5
      %p144 = pnand %p142, %p143
      %p145 = pneg %p144
      // Predicated region
      $region9: #{tpu_custom_call.1} parent=5 // pred_check
        _
      $region10: #{tpu_custom_call.1} parent=5 // pred_check_branch
        %147 = sbr.rel (%p144) target = $region12
      $region11: #{tpu_custom_call.1} parent=5 // pred_region
        %s148 = ssub.s32 %s19, 1
        // Predicated region
        $region13: #{tpu_custom_call.1} parent=11 // pred_check
          %p149 = pneg %p40
        $region14: #{tpu_custom_call.1} parent=11 // pred_check_branch
          %151 = sbr.rel (%p149) target = $region16
        $region15: #{tpu_custom_call.1} parent=11 // pred_region
          %s153 = ssub.s32 16, 16
          %154 = vsyncadd [#allocation5], %s153
          %157 = dma.hbm_to_smem %s0, 16, [#allocation2], [#allocation5]
        $region16: #{tpu_custom_call.1} parent=11 // pred_fallthru
          _
        // Predicated region
        $region17: #{tpu_custom_call.1} parent=11 // pred_check
          %p158 = pneg %p61
        $region18: #{tpu_custom_call.1} parent=11 // pred_check_branch
          %160 = sbr.rel (%p158) target = $region20
        $region19: #{tpu_custom_call.1} parent=11 // pred_region
          %s162 = ssub.s32 16, 16
          %163 = vsyncadd [#allocation6], %s162
          %s165 = sshll.u32 %s1, 4
          %s166 = int_to_ptr.vmem [resolvable:$true] %s165
          %168 = dma.vmem_to_smem %s166, 16, [#allocation7], [#allocation6]
        $region20: #{tpu_custom_call.1} parent=11 // pred_fallthru
          _
        // Predicated region
        $region21: #{tpu_custom_call.1} parent=11 // pred_check
          %p169 = pneg %p82
        $region22: #{tpu_custom_call.1} parent=11 // pred_check_branch
          %171 = sbr.rel (%p169) target = $region24
        $region23: #{tpu_custom_call.1} parent=11 // pred_region
          %s173 = ssub.s32 128, 128
          %174 = vsyncadd [#allocation3], %s173
          %s175 = sshll.u32 [#allocation8], 4
          %s176 = int_to_ptr.vmem [resolvable:$true] %s175
          %181 = dma.hbm_to_vmem [thread:$0]  %s2, 128, %s176, [#allocation3], 64, 64, 4
        $region24: #{tpu_custom_call.1} parent=11 // pred_fallthru
          _
      $region12: #{tpu_custom_call.1} parent=5 // pred_fallthru
        _
      %p182 = scmp.lt.s32.totalorder %s19, 4
      // Predicated region
      $region25: #{tpu_custom_call.1} parent=5 // pred_check
        %p183 = pneg %p182
      $region26: #{tpu_custom_call.1} parent=5 // pred_check_branch
        %185 = sbr.rel (%p183) target = $region28
      $region27: #{tpu_custom_call.1} parent=5 // pred_region
        // Predicated region
        $region29: #{tpu_custom_call.1} parent=27 // pred_check
          %p186 = pneg %p102
        $region30: #{tpu_custom_call.1} parent=27 // pred_check_branch
          %188 = sbr.rel (%p186) target = $region32
        $region31: #{tpu_custom_call.1} parent=27 // pred_region
          %s189 = sand.u32 %s92, 1
          %s190 = scalar_lea.sflag [#allocation10], %s189
          %s191 = sand.u32 %s92, 1
          %s192 = smul.addr %s191, 128
          %s193 = scalar_lea.vmem [#allocation9], %s192
          %s195 = ssub.s32 2048, 2048
          %196 = vsyncadd %s190, %s195
          %s197 = smul.addr %s19, 16
          %s198 = smul.addr %s197, 128
          %s199 = scalar_lea.hbm %s3, %s198
          %s200 = sshll.u32 %s193, 4
          %s201 = int_to_ptr.vmem [resolvable:$true] %s200
          %206 = dma.hbm_to_vmem [thread:$0]  %s199, 2048, %s201, %s190, 128, 128, 8
        $region32: #{tpu_custom_call.1} parent=27 // pred_fallthru
          _
      $region28: #{tpu_custom_call.1} parent=5 // pred_fallthru
        _
      %p207 = scmp.le.s32.totalorder 1, %s19
      %p208 = scmp.lt.s32.totalorder %s19, 5
      %p209 = pnand %p207, %p208
      %p210 = pneg %p209
      // Predicated region
      $region33: #{tpu_custom_call.1} parent=5 // pred_check
        _
      $region34: #{tpu_custom_call.1} parent=5 // pred_check_branch
        %212 = sbr.rel (%p209) target = $region36
      $region35: #{tpu_custom_call.1} parent=5 // pred_region
        %s213 = ssub.s32 %s19, 1
        // Predicated region
        $region37: #{tpu_custom_call.1} parent=35 // pred_check
          %p214 = pneg %p40
        $region38: #{tpu_custom_call.1} parent=35 // pred_check_branch
          %216 = sbr.rel (%p214) target = $region40
        $region39: #{tpu_custom_call.1} parent=35 // pred_region
          %217 = dma.done [#allocation5], 16
        $region40: #{tpu_custom_call.1} parent=35 // pred_fallthru
          _
        // Predicated region
        $region41: #{tpu_custom_call.1} parent=35 // pred_check
          %p218 = pneg %p61
        $region42: #{tpu_custom_call.1} parent=35 // pred_check_branch
          %220 = sbr.rel (%p218) target = $region44
        $region43: #{tpu_custom_call.1} parent=35 // pred_region
          %221 = dma.done [#allocation6], 16
        $region44: #{tpu_custom_call.1} parent=35 // pred_fallthru
          _
        // Predicated region
        $region45: #{tpu_custom_call.1} parent=35 // pred_check
          %p222 = pneg %p82
        $region46: #{tpu_custom_call.1} parent=35 // pred_check_branch
          %224 = sbr.rel (%p222) target = $region48
        $region47: #{tpu_custom_call.1} parent=35 // pred_region
          %225 = dma.done [#allocation3], 128
        $region48: #{tpu_custom_call.1} parent=35 // pred_fallthru
          _
        %s226 = sand.u32 %s95, 1
        %s227 = scalar_lea.sflag [#allocation10], %s226
        %s228 = sand.u32 %s95, 1
        %s229 = smul.addr %s228, 128
        %s230 = scalar_lea.vmem [#allocation9], %s229
        // Predicated region
        $region49: #{tpu_custom_call.1} parent=35 // pred_check
          %p231 = pneg %p108
        $region50: #{tpu_custom_call.1} parent=35 // pred_check_branch
          %233 = sbr.rel (%p231) target = $region52
        $region51: #{tpu_custom_call.1} parent=35 // pred_region
          %234 = dma.done %s227, 2048
        $region52: #{tpu_custom_call.1} parent=35 // pred_fallthru
          _
        %235 = sfence
        %p236 = pneg %p40
        %p237 = pneg %p37
        %p238 = pneg %p61
        %p239 = pneg %p58
        %p240 = pneg %p82
        %p241 = pneg %p79
        %s242 = sand.u32 %s95, 1
        %s243 = scalar_lea.sflag [#allocation10], %s242
        %s244 = sand.u32 %s95, 1
        %s245 = smul.addr %s244, 128
        %s246 = scalar_lea.vmem [#allocation9], %s245
        %p247 = pneg %p108
        %p248 = pneg %p105
        %p249 = pneg %p134
        %p250 = pneg %p131
        %s251 = sand.u32 %s121, 1
        %s252 = scalar_lea.sflag [#allocation4], %s251
        %s253 = sand.u32 %s121, 1
        %s254 = smul.addr %s253, 8
        %s255 = scalar_lea.vmem [#allocation11], %s254
        %v256 = vld [vmem:[%s230] sm:$0xff]
        %v257 = vld [vmem:[%s230 + $0x8] sm:$0xff]
        %v258 = vld [vmem:[%s230 + $0x10] sm:$0xff]
        %v259 = vld [vmem:[%s230 + $0x18] sm:$0xff]
        %v260 = vld [vmem:[%s230 + $0x20] sm:$0xff]
        %v261 = vld [vmem:[%s230 + $0x28] sm:$0xff]
        %v262 = vld [vmem:[%s230 + $0x30] sm:$0xff]
        %v263 = vld [vmem:[%s230 + $0x38] sm:$0xff]
        %v264 = vld [vmem:[%s230 + $0x40] sm:$0xff]
        %v265 = vld [vmem:[%s230 + $0x48] sm:$0xff]
        %v266 = vld [vmem:[%s230 + $0x50] sm:$0xff]
        %v267 = vld [vmem:[%s230 + $0x58] sm:$0xff]
        %v268 = vld [vmem:[%s230 + $0x60] sm:$0xff]
        %v269 = vld [vmem:[%s230 + $0x68] sm:$0xff]
        %v270 = vld [vmem:[%s230 + $0x70] sm:$0xff]
        %v271 = vld [vmem:[%s230 + $0x78] sm:$0xff]
        %v272 = vld [vmem:[#allocation8] sm:$0xf]
        %273 = vmatprep.subr.mxu0 0.0
        %274 = vmatpush1.msra.mxu0 %v271
        %275 = vmatprep.subr.mxu0 0.0
        %276 = vmatpush1.msra.mxu0 %v270
        %277 = vmatprep.subr.mxu0 0.0
        %278 = vmatpush1.msra.mxu0 %v269
        %279 = vmatprep.subr.mxu0 0.0
        %280 = vmatpush1.msra.mxu0 %v268
        %281 = vmatprep.subr.mxu0 0.0
        %282 = vmatpush1.msra.mxu0 %v267
        %283 = vmatprep.subr.mxu0 0.0
        %284 = vmatpush1.msra.mxu0 %v266
        %285 = vmatprep.subr.mxu0 0.0
        %286 = vmatpush1.msra.mxu0 %v265
        %287 = vmatprep.subr.mxu0 0.0
        %288 = vmatpush1.msra.mxu0 %v264
        %289 = vmatprep.subr.mxu0 0.0
        %290 = vmatpush1.msra.mxu0 %v263
        %291 = vmatprep.subr.mxu0 0.0
        %292 = vmatpush1.msra.mxu0 %v262
        %293 = vmatprep.subr.mxu0 0.0
        %294 = vmatpush1.msra.mxu0 %v261
        %295 = vmatprep.subr.mxu0 0.0
        %296 = vmatpush1.msra.mxu0 %v260
        %297 = vmatprep.subr.mxu0 0.0
        %298 = vmatpush1.msra.mxu0 %v259
        %299 = vmatprep.subr.mxu0 0.0
        %300 = vmatpush1.msra.mxu0 %v258
        %301 = vmatprep.subr.mxu0 0.0
        %302 = vmatpush1.msra.mxu0 %v257
        %303 = vmatprep.subr.mxu0 0.0
        %304 = vmatpush1.msra.mxu0 %v256
        %305 = vmatprep.subr.mxu0 0.0
        %306 = vmatpush2.msra.mxu0 0.0
        %307 = vmatprep.subr.mxu0 0.0
        %308 = vmatpush2.msra.mxu0 0.0
        %309 = vmatprep.subr.mxu0 0.0
        %310 = vmatpush2.msra.mxu0 0.0
        %311 = vmatprep.subr.mxu0 0.0
        %312 = vmatpush2.msra.mxu0 0.0
        %313 = vmatprep.subr.mxu0 0.0
        %314 = vmatpush2.msra.mxu0 0.0
        %315 = vmatprep.subr.mxu0 0.0
        %316 = vmatpush2.msra.mxu0 0.0
        %317 = vmatprep.subr.mxu0 0.0
        %318 = vmatpush2.msra.mxu0 0.0
        %319 = vmatprep.subr.mxu0 0.0
        %320 = vmatpush2.msra.mxu0 0.0
        %321 = vmatprep.subr.mxu0 0.0
        %322 = vmatpush2.msra.mxu0 0.0
        %323 = vmatprep.subr.mxu0 0.0
        %324 = vmatpush2.msra.mxu0 0.0
        %325 = vmatprep.subr.mxu0 0.0
        %326 = vmatpush2.msra.mxu0 0.0
        %327 = vmatprep.subr.mxu0 0.0
        %328 = vmatpush2.msra.mxu0 0.0
        %329 = vmatprep.subr.mxu0 0.0
        %330 = vmatpush2.msra.mxu0 0.0
        %331 = vmatprep.subr.mxu0 0.0
        %332 = vmatpush2.msra.mxu0 0.0
        %333 = vmatprep.subr.mxu0 0.0
        %334 = vmatpush2.msra.mxu0 0.0
        %335 = vmatprep.subr.mxu0 0.0
        %336 = vmatpush2.msra.mxu0 0.0
        %337 = vmatprep.mubr.f32.mxu0 0.0
        %338 = vmatmul.mubr.f32.gmra.mxu0 %v272
        %v339 = vpop.f32.mrf.mxu0
        %v340 = vadd.f32 0.0, %v339
        %v341 = vpop.f32.mrf.mxu0
        %342 = vdwg.mxu0
        %343 = vst [vmem:[%s255] sm:$0xf] %v340
        %vm344 = vcmask 1043456
        %v345 = vsel %vm344, %v340, 0.0
        %346 = vadd.xlane.f32.xlu0 %v345
        %v347 = vpop.xlane.xlu0 %346
        %v348 = vrot.slane %v347, 4
        %v349 = vadd.f32 %v347, %v348
        %v350 = vrot.slane %v349, 2
        %v351 = vadd.f32 %v349, %v350
        %v352 = vrot.slane %v351, 1
        %v353 = vadd.f32 %v351, %v352
        %s354 = vtos %v353
        %s355 = sadd.f32 %s354, 0.0
        %v356 = vmul.f32 %v340, %v340
        %v357 = vsel %vm344, %v356, 0.0
        %358 = vadd.xlane.f32.xlu0 %v357
        %v359 = vpop.xlane.xlu0 %358
        %v360 = vrot.slane %v359, 4
        %v361 = vadd.f32 %v359, %v360
        %v362 = vrot.slane %v361, 2
        %v363 = vadd.f32 %v361, %v362
        %v364 = vrot.slane %v363, 1
        %v365 = vadd.f32 %v363, %v364
        %s366 = vtos %v365
        %s367 = sadd.f32 %s366, 0.0
        %s368 = scalar_lea.vmem [#allocation8], 4
        %v369 = vld [vmem:[%s368] sm:$0xf]
        %370 = vmatprep.subr.mxu0 0.0
        %371 = vmatpush1.msra.mxu0 %v271
        %372 = vmatprep.subr.mxu0 0.0
        %373 = vmatpush1.msra.mxu0 %v270
        %374 = vmatprep.subr.mxu0 0.0
        %375 = vmatpush1.msra.mxu0 %v269
        %376 = vmatprep.subr.mxu0 0.0
        %377 = vmatpush1.msra.mxu0 %v268
        %378 = vmatprep.subr.mxu0 0.0
        %379 = vmatpush1.msra.mxu0 %v267
        %380 = vmatprep.subr.mxu0 0.0
        %381 = vmatpush1.msra.mxu0 %v266
        %382 = vmatprep.subr.mxu0 0.0
        %383 = vmatpush1.msra.mxu0 %v265
        %384 = vmatprep.subr.mxu0 0.0
        %385 = vmatpush1.msra.mxu0 %v264
        %386 = vmatprep.subr.mxu0 0.0
        %387 = vmatpush1.msra.mxu0 %v263
        %388 = vmatprep.subr.mxu0 0.0
        %389 = vmatpush1.msra.mxu0 %v262
        %390 = vmatprep.subr.mxu0 0.0
        %391 = vmatpush1.msra.mxu0 %v261
        %392 = vmatprep.subr.mxu0 0.0
        %393 = vmatpush1.msra.mxu0 %v260
        %394 = vmatprep.subr.mxu0 0.0
        %395 = vmatpush1.msra.mxu0 %v259
        %396 = vmatprep.subr.mxu0 0.0
        %397 = vmatpush1.msra.mxu0 %v258
        %398 = vmatprep.subr.mxu0 0.0
        %399 = vmatpush1.msra.mxu0 %v257
        %400 = vmatprep.subr.mxu0 0.0
        %401 = vmatpush1.msra.mxu0 %v256
        %402 = vmatprep.subr.mxu0 0.0
        %403 = vmatpush2.msra.mxu0 0.0
        %404 = vmatprep.subr.mxu0 0.0
        %405 = vmatpush2.msra.mxu0 0.0
        %406 = vmatprep.subr.mxu0 0.0
        %407 = vmatpush2.msra.mxu0 0.0
        %408 = vmatprep.subr.mxu0 0.0
        %409 = vmatpush2.msra.mxu0 0.0
        %410 = vmatprep.subr.mxu0 0.0
        %411 = vmatpush2.msra.mxu0 0.0
        %412 = vmatprep.subr.mxu0 0.0
        %413 = vmatpush2.msra.mxu0 0.0
        %414 = vmatprep.subr.mxu0 0.0
        %415 = vmatpush2.msra.mxu0 0.0
        %416 = vmatprep.subr.mxu0 0.0
        %417 = vmatpush2.msra.mxu0 0.0
        %418 = vmatprep.subr.mxu0 0.0
        %419 = vmatpush2.msra.mxu0 0.0
        %420 = vmatprep.subr.mxu0 0.0
        %421 = vmatpush2.msra.mxu0 0.0
        %422 = vmatprep.subr.mxu0 0.0
        %423 = vmatpush2.msra.mxu0 0.0
        %424 = vmatprep.subr.mxu0 0.0
        %425 = vmatpush2.msra.mxu0 0.0
        %426 = vmatprep.subr.mxu0 0.0
        %427 = vmatpush2.msra.mxu0 0.0
        %428 = vmatprep.subr.mxu0 0.0
        %429 = vmatpush2.msra.mxu0 0.0
        %430 = vmatprep.subr.mxu0 0.0
        %431 = vmatpush2.msra.mxu0 0.0
        %432 = vmatprep.subr.mxu0 0.0
        %433 = vmatpush2.msra.mxu0 0.0
        %434 = vmatprep.mubr.f32.mxu0 0.0
        %435 = vmatmul.mubr.f32.gmra.mxu0 %v369
        %v436 = vpop.f32.mrf.mxu0
        %v437 = vadd.f32 0.0, %v436
        %v438 = vpop.f32.mrf.mxu0
        %439 = vdwg.mxu0
        %s440 = scalar_lea.vmem %s255, 4 [#allocation11]
        %441 = vst [vmem:[%s440] sm:$0xf] %v437
        %v442 = vsel %vm344, %v437, 0.0
        %443 = vadd.xlane.f32.xlu0 %v442
        %v444 = vpop.xlane.xlu0 %443
        %v445 = vrot.slane %v444, 4
        %v446 = vadd.f32 %v444, %v445
        %v447 = vrot.slane %v446, 2
        %v448 = vadd.f32 %v446, %v447
        %v449 = vrot.slane %v448, 1
        %v450 = vadd.f32 %v448, %v449
        %s451 = vtos %v450
        %s452 = sadd.f32 %s355, %s451
        %v453 = vmul.f32 %v437, %v437
        %v454 = vsel %vm344, %v453, 0.0
        %455 = vadd.xlane.f32.xlu0 %v454
        %v456 = vpop.xlane.xlu0 %455
        %v457 = vrot.slane %v456, 4
        %v458 = vadd.f32 %v456, %v457
        %v459 = vrot.slane %v458, 2
        %v460 = vadd.f32 %v458, %v459
        %v461 = vrot.slane %v460, 1
        %v462 = vadd.f32 %v460, %v461
        %s463 = vtos %v462
        %s464 = sadd.f32 %s367, %s463
        %s465 = smul.f32 %s452, 0.0078125
        %s466 = smul.f32 %s464, 0.0078125
        %s467 = smul.f32 %s465, %s465
        %s468 = ssub.f32 %s466, %s467
        %v469 = vstv %s468
        %v470 = vrsqrt.pop %v469
        %s471 = vtos %v470
        %s472 = sld [smem:[#allocation2 + %s24]]
        %s473 = smul.f32 %s471, %s472
        %s474 = sld [smem:[#allocation7 + %s24]]
        %s475 = smul.f32 %s465, %s473
        %s476 = ssub.f32 %s474, %s475
        %v477 = vld [vmem:[%s255] sm:$0xf]
        %v478 = vstv %s473
        %v479 = vmul.f32 %v477, %v478
        %v480 = vstv %s476
        %v481 = vadd.f32 %v479, %v480
        %482 = vst [vmem:[%s255] sm:$0xf] %v481
        %v483 = vld [vmem:[%s440] sm:$0xf]
        %v484 = vmul.f32 %v483, %v478
        %v485 = vadd.f32 %v484, %v480
        %486 = vst [vmem:[%s440] sm:$0xf] %v485
        %s487 = sand.u32 %s121, 1
        %s488 = scalar_lea.sflag [#allocation4], %s487
        %s489 = sand.u32 %s121, 1
        %s490 = smul.addr %s489, 8
        %s491 = scalar_lea.vmem [#allocation11], %s490
        // Predicated region
        $region53: #{tpu_custom_call.1} parent=35 // pred_check
          %p492 = pneg %p131
        $region54: #{tpu_custom_call.1} parent=35 // pred_check_branch
          %494 = sbr.rel (%p492) target = $region56
        $region55: #{tpu_custom_call.1} parent=35 // pred_region
          %s496 = ssub.s32 128, 128
          %497 = vsyncadd %s488, %s496
          %s498 = smul.addr %s24, 64
          %s499 = scalar_lea.hbm %s4, %s498
          %s500 = sshll.u32 %s491, 4
          %s501 = int_to_ptr.vmem [resolvable:$true] %s500
          %506 = dma.vmem_to_hbm [thread:$0]  %s501, 128, %s499, %s488, 64, 256, 4
        $region56: #{tpu_custom_call.1} parent=35 // pred_fallthru
          _
      $region36: #{tpu_custom_call.1} parent=5 // pred_fallthru
        _
      %p507 = scmp.le.s32.totalorder 2, %s19
      // Predicated region
      $region57: #{tpu_custom_call.1} parent=5 // pred_check
        %p508 = pneg %p507
      $region58: #{tpu_custom_call.1} parent=5 // pred_check_branch
        %510 = sbr.rel (%p508) target = $region60
      $region59: #{tpu_custom_call.1} parent=5 // pred_region
        %s511 = ssub.s32 %s19, 2
        // Predicated region
        $region61: #{tpu_custom_call.1} parent=59 // pred_check
          %p512 = pneg %p137
        $region62: #{tpu_custom_call.1} parent=59 // pred_check_branch
          %514 = sbr.rel (%p512) target = $region64
        $region63: #{tpu_custom_call.1} parent=59 // pred_region
          %s515 = sand.u32 %s122, 1
          %s516 = scalar_lea.sflag [#allocation4], %s515
          %s517 = sand.u32 %s122, 1
          %s518 = smul.addr %s517, 8
          %s519 = scalar_lea.vmem [#allocation11], %s518
          %520 = dma.done %s516, 128
        $region64: #{tpu_custom_call.1} parent=59 // pred_fallthru
          _
      $region60: #{tpu_custom_call.1} parent=5 // pred_fallthru
        _
    $region6: #{tpu_custom_call.1} parent=1 // loop_footer
      %s23 = sadd.s32 1, %s19
    $region7: #{tpu_custom_call.1} parent=1 // loop_footer_branch
      %18 = sbr.rel target = $region3
    $region8: #{tpu_custom_call.1} parent=1 // loop_exit
      _
    %521 = vsyncpa [#allocation3], 1
    %s522 = scalar_lea.sflag [#allocation3], 1
    %523 = vsyncpa %s522, 1
    %524 = vsyncpa [#allocation10], 1
    %s525 = scalar_lea.sflag [#allocation10], 1
    %526 = vsyncpa %s525, 1
    %527 = vsyncpa [#allocation4], 1
    %s528 = scalar_lea.sflag [#allocation4], 1
    %529 = vsyncpa %s528, 1
    %530 = vsyncpa [#allocation5], 1
    %s531 = scalar_lea.sflag [#allocation5], 1
    %532 = vsyncpa %s531, 1
    %533 = vsyncpa [#allocation6], 1
    %s534 = scalar_lea.sflag [#allocation6], 1
    %535 = vsyncpa %s534, 1

</llo_original>
